<compile_context>
chip_gen: v6e
topology: v6e:2x2x1
jax: 0.10.0
libtpu: 0.0.40
codegen_flags: <defaults>
</compile_context>

<pallas_src>
import functools

import jax
import jax.numpy as jnp
from jax import lax
from jax.experimental import pallas as pl
from jax.experimental.pallas import tpu as pltpu

_SQRT_HALF = 0.7071067811865476  # 1/sqrt(2)


def _gelu_exact(x):
    # PyTorch's default nn.GELU() is the exact erf-based form.
    return 0.5 * x * (1.0 + lax.erf(x * _SQRT_HALF))


def _ffn_kernel_single(x_ref, w_in_ref, b_in_ref, w_out_ref, b_out_ref, o_ref,
                       *, precision):
    # Whole num_ff in one shot: no scratch, write the output tile directly.
    h = jnp.dot(x_ref[...], w_in_ref[...],
                preferred_element_type=jnp.float32, precision=precision)
    h = _gelu_exact(h + b_in_ref[...].astype(jnp.float32))
    y = jnp.dot(h.astype(w_out_ref.dtype), w_out_ref[...],
                preferred_element_type=jnp.float32, precision=precision)
    o_ref[...] = (y + b_out_ref[...].astype(jnp.float32)).astype(o_ref.dtype)


def _ffn_kernel_tiled(x_ref, w_in_ref, b_in_ref, w_out_ref, b_out_ref, o_ref,
                      acc_ref, *, precision):
    # x_ref:     (rt, H)    w_in_ref: (H, tf)   b_in_ref:  (1, tf)
    # w_out_ref: (tf, H)    b_out_ref: (1, H)   o_ref:     (rt, H)
    # acc_ref:   (rt, H) f32 VMEM scratch, resident across the k (num_ff) axis.
    k = pl.program_id(1)

    @pl.when(k == 0)
    def _():
        # Fuse the output bias into the accumulator init.
        acc_ref[...] = jnp.broadcast_to(
            b_out_ref[...].astype(jnp.float32), acc_ref.shape)

    h = jnp.dot(x_ref[...], w_in_ref[...],
                preferred_element_type=jnp.float32, precision=precision)
    h = _gelu_exact(h + b_in_ref[...].astype(jnp.float32))
    acc_ref[...] += jnp.dot(h.astype(w_out_ref.dtype), w_out_ref[...],
                            preferred_element_type=jnp.float32,
                            precision=precision)

    @pl.when(k == pl.num_programs(1) - 1)
    def _():
        o_ref[...] = acc_ref[...].astype(o_ref.dtype)


def _round_up(a, m):
    return (a + m - 1) // m * m


def _pick_ff_tile(num_ff, ff_tile):
    """Largest divisor of num_ff that is a multiple of 128 and <= ff_tile.

    A partial reduction block would add garbage into the accumulator, and a
    non-multiple-of-128 tile violates the lane constraint on the W_in tile,
    so fall back to a single reduction step otherwise.
    """
    if num_ff <= ff_tile:
        return num_ff
    start = ff_tile - ff_tile % 128
    for t in range(start, 127, -128):
        if num_ff % t == 0:
            return t
    return num_ff


def position_wise_feed_forward(h_V, w_in, b_in, w_out, b_out,
                               *, row_tile=256, ff_tile=512, precision=None):
    """h_V: (..., num_hidden). Returns the same shape/dtype as h_V."""
    num_hidden = h_V.shape[-1]
    num_ff = w_in.shape[-1]
    orig_shape = h_V.shape

    x2d = h_V.reshape(-1, num_hidden)
    n_rows = x2d.shape[0]

    # Row tile: large and layout-friendly (multiple of 32 covers f32/bf16/int8
    # sublane packing), but never much larger than the actual row count.
    rt = min(_round_up(row_tile, 32), _round_up(n_rows, 32))
    tf = _pick_ff_tile(num_ff, ff_tile)

    b_in2d = b_in.reshape(1, num_ff)
    b_out2d = b_out.reshape(1, num_hidden)

    n_row_blocks = pl.cdiv(n_rows, rt)
    n_ff_blocks = num_ff // tf

    # Rough VMEM budget (double-buffered tiles + f32 accumulator + intermediate).
    a_sz = jnp.dtype(h_V.dtype).itemsize
    w_sz = jnp.dtype(w_in.dtype).itemsize
    vmem_bytes = (2 * rt * num_hidden * a_sz          # x tiles
                  + 2 * num_hidden * tf * w_sz        # W_in tiles
                  + 2 * tf * w_sz                     # b_in tiles
                  + 2 * tf * num_hidden * w_sz        # W_out tiles
                  + 2 * num_hidden * w_sz             # b_out
                  + 2 * rt * num_hidden * a_sz        # out tiles
                  + rt * num_hidden * 4               # f32 accumulator
                  + rt * tf * 4)                      # f32 intermediate h
    vmem_limit = int(min(64 * 1024 * 1024, max(32 * 1024 * 1024, 2 * vmem_bytes)))

    cost = pl.CostEstimate(
        flops=4 * n_rows * num_hidden * num_ff,       # two matmuls
        transcendentals=n_rows * num_ff,              # erf on the intermediate
        bytes_accessed=(2 * n_rows * num_hidden * a_sz
                        + 2 * num_hidden * num_ff * w_sz
                        + (num_ff + num_hidden) * w_sz),
    )
    params = pltpu.CompilerParams(vmem_limit_bytes=vmem_limit)

    # TODO(synk): for num_hidden < 128 (toy shapes) the output stores are
    # lane-masked; folding rows into lanes would help but is skipped here.
    if n_ff_blocks == 1:
        kernel = functools.partial(_ffn_kernel_single, precision=precision)
        out2d = pl.pallas_call(
            kernel,
            out_shape=jax.ShapeDtypeStruct((n_rows, num_hidden), h_V.dtype),
            grid_spec=pltpu.PrefetchScalarGridSpec(
                num_scalar_prefetch=0,
                grid=(n_row_blocks,),
                in_specs=[
                    pl.BlockSpec((rt, num_hidden), lambda i: (i, 0)),       # x
                    pl.BlockSpec((num_hidden, num_ff), lambda i: (0, 0)),   # W_in
                    pl.BlockSpec((1, num_ff), lambda i: (0, 0)),            # b_in
                    pl.BlockSpec((num_ff, num_hidden), lambda i: (0, 0)),   # W_out
                    pl.BlockSpec((1, num_hidden), lambda i: (0, 0)),        # b_out
                ],
                out_specs=pl.BlockSpec((rt, num_hidden), lambda i: (i, 0)),
            ),
            compiler_params=pltpu.CompilerParams(
                dimension_semantics=("parallel",),
                vmem_limit_bytes=vmem_limit),
            cost_estimate=cost,
        )(x2d, w_in, b_in2d, w_out, b_out2d)
    else:
        kernel = functools.partial(_ffn_kernel_tiled, precision=precision)
        out2d = pl.pallas_call(
            kernel,
            out_shape=jax.ShapeDtypeStruct((n_rows, num_hidden), h_V.dtype),
            grid_spec=pltpu.PrefetchScalarGridSpec(
                num_scalar_prefetch=0,
                grid=(n_row_blocks, n_ff_blocks),
                in_specs=[
                    pl.BlockSpec((rt, num_hidden), lambda i, k: (i, 0)),     # x
                    pl.BlockSpec((num_hidden, tf), lambda i, k: (0, k)),     # W_in
                    pl.BlockSpec((1, tf), lambda i, k: (0, k)),              # b_in
                    pl.BlockSpec((tf, num_hidden), lambda i, k: (k, 0)),     # W_out
                    pl.BlockSpec((1, num_hidden), lambda i, k: (0, 0)),      # b_out
                ],
                out_specs=pl.BlockSpec((rt, num_hidden), lambda i, k: (i, 0)),
                scratch_shapes=[pltpu.VMEM((rt, num_hidden), jnp.float32)],
            ),
            compiler_params=pltpu.CompilerParams(
                dimension_semantics=("parallel", "arbitrary"),
                vmem_limit_bytes=vmem_limit),
            cost_estimate=cost,
        )(x2d, w_in, b_in2d, w_out, b_out2d)

    return out2d.reshape(orig_shape)


def _init_params(key, num_hidden, num_ff, dtype=jnp.float32):
    """Deterministic synthetic init (uniform, roughly matching nn.Linear scale)."""
    k1, k2, k3, k4 = jax.random.split(key, 4)
    lim_in = 1.0 / float(jnp.sqrt(num_hidden))
    lim_out = 1.0 / float(jnp.sqrt(num_ff))
    # Stored as (in_features, out_features) = torch weight transposed.
    w_in = jax.random.uniform(k1, (num_hidden, num_ff), dtype, -lim_in, lim_in)
    b_in = jax.random.uniform(k2, (num_ff,), dtype, -lim_in, lim_in)
    w_out = jax.random.uniform(k3, (num_ff, num_hidden), dtype, -lim_out, lim_out)
    b_out = jax.random.uniform(k4, (num_hidden,), dtype, -lim_out, lim_out)
    return w_in, b_in, w_out, b_out


def _reference(h_V, w_in, b_in, w_out, b_out):
    hp = jax.lax.Precision.HIGHEST
    h = jax.nn.gelu(jnp.dot(h_V, w_in, precision=hp) + b_in, approximate=False)
    return jnp.dot(h, w_out, precision=hp) + b_out


if __name__ == "__main__":
    key = jax.random.PRNGKey(0)
    hp = jax.lax.Precision.HIGHEST

    # --- Test 1: toy shapes from the module (single-step reduction path) ---
    batch, seq, num_hidden, num_ff = 2, 8, 32, 64
    k_x, k_p, key = jax.random.split(key, 3)
    h_V = jax.random.normal(k_x, (batch, seq, num_hidden), dtype=jnp.float32)
    w_in, b_in, w_out, b_out = _init_params(k_p, num_hidden, num_ff)

    out = position_wise_feed_forward(h_V, w_in, b_in, w_out, b_out, precision=hp)
    out = jax.block_until_ready(out)
    ref = _reference(h_V, w_in, b_in, w_out, b_out)
    assert out.shape == h_V.shape
    assert jnp.allclose(out, ref, atol=1e-5, rtol=1e-5)

    # --- Test 2: small shapes that exercise the tiled (num_ff-reduction) path ---
    batch, seq, num_hidden, num_ff = 3, 16, 128, 512
    k_x, k_p, key = jax.random.split(key, 3)
    h_V2 = jax.random.normal(k_x, (batch, seq, num_hidden), dtype=jnp.float32)
    w_in2, b_in2, w_out2, b_out2 = _init_params(k_p, num_hidden, num_ff)

    out2 = position_wise_feed_forward(h_V2, w_in2, b_in2, w_out2, b_out2,
                                      ff_tile=256, precision=hp)
    out2 = jax.block_until_ready(out2)
    ref2 = _reference(h_V2, w_in2, b_in2, w_out2, b_out2)
    assert out2.shape == h_V2.shape
    assert jnp.allclose(out2, ref2, atol=1e-5, rtol=1e-5)

    print("KERNEL_OK")
</pallas_src>

<mosaic_0001>
module attributes {stable_mosaic.version = 11 : i64} {
  func.func @_ffn_kernel_single(%arg0: i32, %arg1: memref<32x32xf32, #tpu.memory_space<vmem>>, %arg2: memref<32x64xf32, #tpu.memory_space<vmem>>, %arg3: memref<1x64xf32, #tpu.memory_space<vmem>>, %arg4: memref<64x32xf32, #tpu.memory_space<vmem>>, %arg5: memref<1x32xf32, #tpu.memory_space<vmem>>, %arg6: memref<32x32xf32, #tpu.memory_space<vmem>>) attributes {dimension_semantics = [#tpu.dimension_semantics<parallel>], iteration_bounds = array<i64: 1>, scalar_prefetch = 0 : i64, scratch_operands = 0 : i64, tpu.core_type = #tpu.core_type<tc>, window_params = [{transform_indices = @transform_0, window_bounds = array<i64: 32, 32>}, {pipeline_mode = #tpu.pipeline_mode<synchronous>, transform_indices = @transform_1, window_bounds = array<i64: 32, 64>}, {pipeline_mode = #tpu.pipeline_mode<synchronous>, transform_indices = @transform_2, window_bounds = array<i64: 1, 64>}, {pipeline_mode = #tpu.pipeline_mode<synchronous>, transform_indices = @transform_3, window_bounds = array<i64: 64, 32>}, {pipeline_mode = #tpu.pipeline_mode<synchronous>, transform_indices = @transform_4, window_bounds = array<i64: 1, 32>}, {transform_indices = @transform_5, window_bounds = array<i64: 32, 32>}]} {
    %c0 = arith.constant 0 : index
    %c0_0 = arith.constant 0 : index
    %0 = vector.load %arg1[%c0, %c0_0] : memref<32x32xf32, #tpu.memory_space<vmem>>, vector<32x32xf32>
    %c0_1 = arith.constant 0 : index
    %c0_2 = arith.constant 0 : index
    %1 = vector.load %arg2[%c0_1, %c0_2] : memref<32x64xf32, #tpu.memory_space<vmem>>, vector<32x64xf32>
    %cst = arith.constant dense<0.000000e+00> : vector<32x64xf32>
    %2 = tpu.matmul %0, %1, %cst {dimension_numbers = #tpu.dot_dimension_numbers<[1], [0], [0], [1], [0, 0, 1, 1], [], []>, precision = #tpu.contract_precision<fp32>} : vector<32x32xf32>, vector<32x64xf32>, vector<32x64xf32> -> vector<32x64xf32>
    %c0_3 = arith.constant 0 : index
    %c0_4 = arith.constant 0 : index
    %3 = vector.load %arg3[%c0_3, %c0_4] : memref<1x64xf32, #tpu.memory_space<vmem>>, vector<1x64xf32>
    %4 = vector.broadcast %3 : vector<1x64xf32> to vector<32x64xf32>
    %5 = arith.addf %2, %4 : vector<32x64xf32>
    %cst_5 = arith.constant 5.000000e-01 : f32
    %6 = vector.broadcast %cst_5 : f32 to vector<32x64xf32>
    %7 = arith.mulf %6, %5 : vector<32x64xf32>
    %cst_6 = arith.constant 0.707106769 : f32
    %8 = vector.broadcast %cst_6 : f32 to vector<32x64xf32>
    %9 = arith.mulf %5, %8 : vector<32x64xf32>
    %10 = math.erf %9 : vector<32x64xf32>
    %cst_7 = arith.constant 1.000000e+00 : f32
    %11 = vector.broadcast %cst_7 : f32 to vector<32x64xf32>
    %12 = arith.addf %11, %10 : vector<32x64xf32>
    %13 = arith.mulf %7, %12 : vector<32x64xf32>
    %c0_8 = arith.constant 0 : index
    %c0_9 = arith.constant 0 : index
    %14 = vector.load %arg4[%c0_8, %c0_9] : memref<64x32xf32, #tpu.memory_space<vmem>>, vector<64x32xf32>
    %cst_10 = arith.constant dense<0.000000e+00> : vector<32x32xf32>
    %15 = tpu.matmul %13, %14, %cst_10 {dimension_numbers = #tpu.dot_dimension_numbers<[1], [0], [0], [1], [0, 0, 1, 1], [], []>, precision = #tpu.contract_precision<fp32>} : vector<32x64xf32>, vector<64x32xf32>, vector<32x32xf32> -> vector<32x32xf32>
    %c0_11 = arith.constant 0 : index
    %c0_12 = arith.constant 0 : index
    %16 = vector.load %arg5[%c0_11, %c0_12] : memref<1x32xf32, #tpu.memory_space<vmem>>, vector<1x32xf32>
    %17 = vector.broadcast %16 : vector<1x32xf32> to vector<32x32xf32>
    %18 = arith.addf %15, %17 : vector<32x32xf32>
    %c0_13 = arith.constant 0 : index
    %c0_14 = arith.constant 0 : index
    %19 = vector.load %arg6[%c0_13, %c0_14] : memref<32x32xf32, #tpu.memory_space<vmem>>, vector<32x32xf32>
    tpu.vector_store %arg6[%c0_13, %c0_14], %18 {strides = array<i32>} : memref<32x32xf32, #tpu.memory_space<vmem>>, vector<32x32xf32>,
    return
  }
  func.func @transform_0(%arg0: i32) -> (i32, i32) {
    %c0_i32 = arith.constant 0 : i32
    %c0_i32_0 = arith.constant 0 : i32
    return %arg0, %c0_i32 : i32, i32
  }
  func.func @transform_1(%arg0: i32) -> (i32, i32) {
    %c0_i32 = arith.constant 0 : i32
    %c0_i32_0 = arith.constant 0 : i32
    %c0_i32_1 = arith.constant 0 : i32
    return %c0_i32, %c0_i32_0 : i32, i32
  }
  func.func @transform_2(%arg0: i32) -> (i32, i32) {
    %c0_i32 = arith.constant 0 : i32
    %c0_i32_0 = arith.constant 0 : i32
    %c0_i32_1 = arith.constant 0 : i32
    return %c0_i32, %c0_i32_0 : i32, i32
  }
  func.func @transform_3(%arg0: i32) -> (i32, i32) {
    %c0_i32 = arith.constant 0 : i32
    %c0_i32_0 = arith.constant 0 : i32
    %c0_i32_1 = arith.constant 0 : i32
    return %c0_i32, %c0_i32_0 : i32, i32
  }
  func.func @transform_4(%arg0: i32) -> (i32, i32) {
    %c0_i32 = arith.constant 0 : i32
    %c0_i32_0 = arith.constant 0 : i32
    %c0_i32_1 = arith.constant 0 : i32
    return %c0_i32, %c0_i32_0 : i32, i32
  }
  func.func @transform_5(%arg0: i32) -> (i32, i32) {
    %c0_i32 = arith.constant 0 : i32
    %c0_i32_0 = arith.constant 0 : i32
    return %arg0, %c0_i32 : i32, i32
  }
}

</mosaic_0001>

<llo_original>
// kernel: tpu_custom_call.1
$region0: #{tpu_custom_call.1}
  #allocation0 [shape = 'u32[]', space=smem, size = 0x4, offset = 0x4, fixed_abs, tag = 'smem constant byte address 0x4 - core index']
  #allocation1 [shape = 'u32[144,128]{1,0:T(1,128)}', space=vmem, size = 0x12000, scoped, tag = 'internal scratch']
  %s0 = inlined_call_operand.vmem [shape: f32[16,32], index: 0, kind: input, shape index: {}]
  %s1 = inlined_call_operand.vmem [shape: f32[32,64], index: 1, kind: input, shape index: {}]
  %s2 = inlined_call_operand.vmem [shape: f32[1,64], index: 2, kind: input, shape index: {}]
  %s3 = inlined_call_operand.vmem [shape: f32[64,32], index: 3, kind: input, shape index: {}]
  %s4 = inlined_call_operand.vmem [shape: f32[1,32], index: 4, kind: input, shape index: {}]
  %s5 = inlined_call_operand.hbm [shape: f32[16,32], index: 5, kind: output, shape index: {}]
  %s6 = sld [smem:[#allocation0]]
  $region30: #{tpu_custom_call.1} parent=0
    _
  %s8 = ssub.s32 1, %s6
  %s9 = scalar_select 0, %s8, %s6
  $region1: #{tpu_custom_call.1} parent=0
    #allocation2 [shape = 'u8[16384]{0}', space=vmem, size = 0x4000, scoped, tag = 'output window, operand 0, single buffered']
    #allocation3 [shape = 's32[1]{0}', space=sflag, size = 0x4, scoped, tag = 'scoped memory for tpu_custom_call.1']
    %10 = vsyncpa [#allocation3], 0
    // Predicated region
    $region2: #{tpu_custom_call.1} parent=1 // pred_check
      _
    $region3: #{tpu_custom_call.1} parent=1 // pred_check_branch
      %12 = sbr.rel (0) target = $region5
    $region4: #{tpu_custom_call.1} parent=1 // pred_region
      _
    $region5: #{tpu_custom_call.1} parent=1 // pred_fallthru
      _
    // Predicated region
    $region6: #{tpu_custom_call.1} parent=1 // pred_check
      _
    $region7: #{tpu_custom_call.1} parent=1 // pred_check_branch
      %14 = sbr.rel (0) target = $region9
    $region8: #{tpu_custom_call.1} parent=1 // pred_region
      _
    $region9: #{tpu_custom_call.1} parent=1 // pred_fallthru
      _
    // Predicated region
    $region10: #{tpu_custom_call.1} parent=1 // pred_check
      _
    $region11: #{tpu_custom_call.1} parent=1 // pred_check_branch
      %16 = sbr.rel (0) target = $region13
    $region12: #{tpu_custom_call.1} parent=1 // pred_region
      _
    $region13: #{tpu_custom_call.1} parent=1 // pred_fallthru
      _
    // Predicated region
    $region14: #{tpu_custom_call.1} parent=1 // pred_check
      _
    $region15: #{tpu_custom_call.1} parent=1 // pred_check_branch
      %18 = sbr.rel (0) target = $region17
    $region16: #{tpu_custom_call.1} parent=1 // pred_region
      _
    $region17: #{tpu_custom_call.1} parent=1 // pred_fallthru
      _
    // Predicated region
    $region18: #{tpu_custom_call.1} parent=1 // pred_check
      _
    $region19: #{tpu_custom_call.1} parent=1 // pred_check_branch
      %20 = sbr.rel (0) target = $region21
    $region20: #{tpu_custom_call.1} parent=1 // pred_region
      _
    $region21: #{tpu_custom_call.1} parent=1 // pred_fallthru
      _
    %v21 = vld [vmem:[%s0] sm:$0xff]
    %v22 = vld [vmem:[%s0 + $0x8] sm:$0xff]
    %v23 = vld [vmem:[%s0 + $0x10] sm:$0xff]
    %v24 = vld [vmem:[%s0 + $0x18] sm:$0xff]
    %v25 = vld [vmem:[%s1] sm:$0xff]
    %v26 = vld [vmem:[%s1 + $0x8] sm:$0xff]
    %v27 = vld [vmem:[%s1 + $0x10] sm:$0xff]
    %v28 = vld [vmem:[%s1 + $0x18] sm:$0xff]
    %v29 = vld [vmem:[%s2] sm:$0x1]
    %v31 = vlaneseq
    %v32 = vshrl.u32 %v31, 7
    %v33 = vsub.s32 0, %v32
    %v34 = vrot.slane %v29, %v33
    %vm36 = vcmask 261120
    %v38 = vsel %vm36, %v21, 0
    %v41 = vsel %vm36, %v22, 0
    %v44 = vsel %vm36, %v23, 0
    %v47 = vsel %vm36, %v24, 0
    %49 = vmatprep.subr.mxu0 0.0
    %50 = vmatpush1.msra.mxu0 0.0
    %51 = vmatprep.subr.mxu0 0.0
    %52 = vmatpush1.msra.mxu0 0.0
    %53 = vmatprep.subr.mxu0 0.0
    %54 = vmatpush1.msra.mxu0 0.0
    %55 = vmatprep.subr.mxu0 0.0
    %56 = vmatpush1.msra.mxu0 0.0
    %57 = vmatprep.subr.mxu0 0.0
    %58 = vmatpush1.msra.mxu0 0.0
    %59 = vmatprep.subr.mxu0 0.0
    %60 = vmatpush1.msra.mxu0 0.0
    %61 = vmatprep.subr.mxu0 0.0
    %62 = vmatpush1.msra.mxu0 0.0
    %63 = vmatprep.subr.mxu0 0.0
    %64 = vmatpush1.msra.mxu0 0.0
    %65 = vmatprep.subr.mxu0 0.0
    %66 = vmatpush1.msra.mxu0 0.0
    %67 = vmatprep.subr.mxu0 0.0
    %68 = vmatpush1.msra.mxu0 0.0
    %69 = vmatprep.subr.mxu0 0.0
    %70 = vmatpush1.msra.mxu0 0.0
    %71 = vmatprep.subr.mxu0 0.0
    %72 = vmatpush1.msra.mxu0 0.0
    %73 = vmatprep.subr.mxu0 0.0
    %v74 = vand.u32 %v28, 4294901760
    %75 = vmatpush1.msra.mxu0 %v74
    %76 = vmatprep.subr.mxu0 0.0
    %v77 = vand.u32 %v27, 4294901760
    %78 = vmatpush1.msra.mxu0 %v77
    %79 = vmatprep.subr.mxu0 0.0
    %v80 = vand.u32 %v26, 4294901760
    %81 = vmatpush1.msra.mxu0 %v80
    %82 = vmatprep.subr.mxu0 0.0
    %v83 = vand.u32 %v25, 4294901760
    %84 = vmatpush1.msra.mxu0 %v83
    %85 = vmatprep.subr.mxu0 0.0
    %86 = vmatpush2.msra.mxu0 0.0
    %87 = vmatprep.subr.mxu0 0.0
    %88 = vmatpush2.msra.mxu0 0.0
    %89 = vmatprep.subr.mxu0 0.0
    %90 = vmatpush2.msra.mxu0 0.0
    %91 = vmatprep.subr.mxu0 0.0
    %92 = vmatpush2.msra.mxu0 0.0
    %93 = vmatprep.subr.mxu0 0.0
    %94 = vmatpush2.msra.mxu0 0.0
    %95 = vmatprep.subr.mxu0 0.0
    %96 = vmatpush2.msra.mxu0 0.0
    %97 = vmatprep.subr.mxu0 0.0
    %98 = vmatpush2.msra.mxu0 0.0
    %99 = vmatprep.subr.mxu0 0.0
    %100 = vmatpush2.msra.mxu0 0.0
    %101 = vmatprep.subr.mxu0 0.0
    %102 = vmatpush2.msra.mxu0 0.0
    %103 = vmatprep.subr.mxu0 0.0
    %104 = vmatpush2.msra.mxu0 0.0
    %105 = vmatprep.subr.mxu0 0.0
    %106 = vmatpush2.msra.mxu0 0.0
    %107 = vmatprep.subr.mxu0 0.0
    %108 = vmatpush2.msra.mxu0 0.0
    %109 = vmatprep.subr.mxu0 0.0
    %110 = vmatpush2.msra.mxu0 0.0
    %111 = vmatprep.subr.mxu0 0.0
    %112 = vmatpush2.msra.mxu0 0.0
    %113 = vmatprep.subr.mxu0 0.0
    %114 = vmatpush2.msra.mxu0 0.0
    %115 = vmatprep.subr.mxu0 0.0
    %116 = vmatpush2.msra.mxu0 0.0
    %117 = vmatprep.mubr.f32.mxu0 0.0
    %v118 = vand.u32 %v38, 4294901760
    %v119 = vsub.f32 %v38, %v118
    %v120 = vand.u32 %v119, 4294901760
    %v121 = vsub.f32 %v119, %v120
    %v122 = vand.u32 %v121, 4294901760
    %123 = vmatmul.mubr.f32.gmra.mxu0 %v122
    %v124 = vpop.f32.mrf.mxu0
    %v125 = vadd.f32 %v34, %v124
    %v126 = vpop.f32.mrf.mxu0
    %127 = vmatprep.mubr.f32.mxu0 0.0
    %v128 = vand.u32 %v41, 4294901760
    %v129 = vsub.f32 %v41, %v128
    %v130 = vand.u32 %v129, 4294901760
    %v131 = vsub.f32 %v129, %v130
    %v132 = vand.u32 %v131, 4294901760
    %133 = vmatmul.mubr.f32.gmra.mxu0 %v132
    %v134 = vpop.f32.mrf.mxu0
    %v135 = vadd.f32 %v34, %v134
    %v136 = vpop.f32.mrf.mxu0
    %137 = vmatprep.mubr.f32.mxu0 0.0
    %v138 = vand.u32 %v44, 4294901760
    %v139 = vsub.f32 %v44, %v138
    %v140 = vand.u32 %v139, 4294901760
    %v141 = vsub.f32 %v139, %v140
    %v142 = vand.u32 %v141, 4294901760
    %143 = vmatmul.mubr.f32.gmra.mxu0 %v142
    %v144 = vpop.f32.mrf.mxu0
    %v145 = vadd.f32 %v34, %v144
    %v146 = vpop.f32.mrf.mxu0
    %147 = vmatprep.mubr.f32.mxu0 0.0
    %v148 = vand.u32 %v47, 4294901760
    %v149 = vsub.f32 %v47, %v148
    %v150 = vand.u32 %v149, 4294901760
    %v151 = vsub.f32 %v149, %v150
    %v152 = vand.u32 %v151, 4294901760
    %153 = vmatmul.mubr.f32.gmra.mxu0 %v152
    %v154 = vpop.f32.mrf.mxu0
    %v155 = vadd.f32 %v34, %v154
    %v156 = vpop.f32.mrf.mxu0
    %157 = vdwg.mxu0
    %158 = vmatprep.subr.mxu0 0.0
    %159 = vmatpush1.msra.mxu0 0.0
    %160 = vmatprep.subr.mxu0 0.0
    %161 = vmatpush1.msra.mxu0 0.0
    %162 = vmatprep.subr.mxu0 0.0
    %163 = vmatpush1.msra.mxu0 0.0
    %164 = vmatprep.subr.mxu0 0.0
    %165 = vmatpush1.msra.mxu0 0.0
    %166 = vmatprep.subr.mxu0 0.0
    %167 = vmatpush1.msra.mxu0 0.0
    %168 = vmatprep.subr.mxu0 0.0
    %169 = vmatpush1.msra.mxu0 0.0
    %170 = vmatprep.subr.mxu0 0.0
    %171 = vmatpush1.msra.mxu0 0.0
    %172 = vmatprep.subr.mxu0 0.0
    %173 = vmatpush1.msra.mxu0 0.0
    %174 = vmatprep.subr.mxu0 0.0
    %175 = vmatpush1.msra.mxu0 0.0
    %176 = vmatprep.subr.mxu0 0.0
    %177 = vmatpush1.msra.mxu0 0.0
    %178 = vmatprep.subr.mxu0 0.0
    %179 = vmatpush1.msra.mxu0 0.0
    %180 = vmatprep.subr.mxu0 0.0
    %181 = vmatpush1.msra.mxu0 0.0
    %182 = vmatprep.subr.mxu0 0.0
    %v183 = vand.u32 %v28, 4294901760
    %v184 = vsub.f32 %v28, %v183
    %v185 = vand.u32 %v184, 4294901760
    %v186 = vsub.f32 %v184, %v185
    %v187 = vand.u32 %v186, 4294901760
    %188 = vmatpush1.msra.mxu0 %v187
    %189 = vmatprep.subr.mxu0 0.0
    %v190 = vand.u32 %v27, 4294901760
    %v191 = vsub.f32 %v27, %v190
    %v192 = vand.u32 %v191, 4294901760
    %v193 = vsub.f32 %v191, %v192
    %v194 = vand.u32 %v193, 4294901760
    %195 = vmatpush1.msra.mxu0 %v194
    %196 = vmatprep.subr.mxu0 0.0
    %v197 = vand.u32 %v26, 4294901760
    %v198 = vsub.f32 %v26, %v197
    %v199 = vand.u32 %v198, 4294901760
    %v200 = vsub.f32 %v198, %v199
    %v201 = vand.u32 %v200, 4294901760
    %202 = vmatpush1.msra.mxu0 %v201
    %203 = vmatprep.subr.mxu0 0.0
    %v204 = vand.u32 %v25, 4294901760
    %v205 = vsub.f32 %v25, %v204
    %v206 = vand.u32 %v205, 4294901760
    %v207 = vsub.f32 %v205, %v206
    %v208 = vand.u32 %v207, 4294901760
    %209 = vmatpush1.msra.mxu0 %v208
    %210 = vmatprep.subr.mxu0 0.0
    %211 = vmatpush2.msra.mxu0 0.0
    %212 = vmatprep.subr.mxu0 0.0
    %213 = vmatpush2.msra.mxu0 0.0
    %214 = vmatprep.subr.mxu0 0.0
    %215 = vmatpush2.msra.mxu0 0.0
    %216 = vmatprep.subr.mxu0 0.0
    %217 = vmatpush2.msra.mxu0 0.0
    %218 = vmatprep.subr.mxu0 0.0
    %219 = vmatpush2.msra.mxu0 0.0
    %220 = vmatprep.subr.mxu0 0.0
    %221 = vmatpush2.msra.mxu0 0.0
    %222 = vmatprep.subr.mxu0 0.0
    %223 = vmatpush2.msra.mxu0 0.0
    %224 = vmatprep.subr.mxu0 0.0
    %225 = vmatpush2.msra.mxu0 0.0
    %226 = vmatprep.subr.mxu0 0.0
    %227 = vmatpush2.msra.mxu0 0.0
    %228 = vmatprep.subr.mxu0 0.0
    %229 = vmatpush2.msra.mxu0 0.0
    %230 = vmatprep.subr.mxu0 0.0
    %231 = vmatpush2.msra.mxu0 0.0
    %232 = vmatprep.subr.mxu0 0.0
    %233 = vmatpush2.msra.mxu0 0.0
    %234 = vmatprep.subr.mxu0 0.0
    %235 = vmatpush2.msra.mxu0 0.0
    %236 = vmatprep.subr.mxu0 0.0
    %237 = vmatpush2.msra.mxu0 0.0
    %238 = vmatprep.subr.mxu0 0.0
    %239 = vmatpush2.msra.mxu0 0.0
    %240 = vmatprep.subr.mxu0 0.0
    %241 = vmatpush2.msra.mxu0 0.0
    %242 = vmatprep.mubr.f32.mxu0 0.0
    %v243 = vand.u32 %v38, 4294901760
    %244 = vmatmul.mubr.f32.gmra.mxu0 %v243
    %v245 = vpop.f32.mrf.mxu0
    %v246 = vadd.f32 %v125, %v245
    %v247 = vpop.f32.mrf.mxu0
    %248 = vmatprep.mubr.f32.mxu0 0.0
    %v249 = vand.u32 %v41, 4294901760
    %250 = vmatmul.mubr.f32.gmra.mxu0 %v249
    %v251 = vpop.f32.mrf.mxu0
    %v252 = vadd.f32 %v135, %v251
    %v253 = vpop.f32.mrf.mxu0
    %254 = vmatprep.mubr.f32.mxu0 0.0
    %v255 = vand.u32 %v44, 4294901760
    %256 = vmatmul.mubr.f32.gmra.mxu0 %v255
    %v257 = vpop.f32.mrf.mxu0
    %v258 = vadd.f32 %v145, %v257
    %v259 = vpop.f32.mrf.mxu0
    %260 = vmatprep.mubr.f32.mxu0 0.0
    %v261 = vand.u32 %v47, 4294901760
    %262 = vmatmul.mubr.f32.gmra.mxu0 %v261
    %v263 = vpop.f32.mrf.mxu0
    %v264 = vadd.f32 %v155, %v263
    %v265 = vpop.f32.mrf.mxu0
    %266 = vdwg.mxu0
    %267 = vmatprep.subr.mxu0 0.0
    %268 = vmatpush1.msra.mxu0 0.0
    %269 = vmatprep.subr.mxu0 0.0
    %270 = vmatpush1.msra.mxu0 0.0
    %271 = vmatprep.subr.mxu0 0.0
    %272 = vmatpush1.msra.mxu0 0.0
    %273 = vmatprep.subr.mxu0 0.0
    %274 = vmatpush1.msra.mxu0 0.0
    %275 = vmatprep.subr.mxu0 0.0
    %276 = vmatpush1.msra.mxu0 0.0
    %277 = vmatprep.subr.mxu0 0.0
    %278 = vmatpush1.msra.mxu0 0.0
    %279 = vmatprep.subr.mxu0 0.0
    %280 = vmatpush1.msra.mxu0 0.0
    %281 = vmatprep.subr.mxu0 0.0
    %282 = vmatpush1.msra.mxu0 0.0
    %283 = vmatprep.subr.mxu0 0.0
    %284 = vmatpush1.msra.mxu0 0.0
    %285 = vmatprep.subr.mxu0 0.0
    %286 = vmatpush1.msra.mxu0 0.0
    %287 = vmatprep.subr.mxu0 0.0
    %288 = vmatpush1.msra.mxu0 0.0
    %289 = vmatprep.subr.mxu0 0.0
    %290 = vmatpush1.msra.mxu0 0.0
    %291 = vmatprep.subr.mxu0 0.0
    %v292 = vand.u32 %v28, 4294901760
    %v293 = vsub.f32 %v28, %v292
    %294 = vmatpush1.msra.mxu0 %v293
    %295 = vmatprep.subr.mxu0 0.0
    %v296 = vand.u32 %v27, 4294901760
    %v297 = vsub.f32 %v27, %v296
    %298 = vmatpush1.msra.mxu0 %v297
    %299 = vmatprep.subr.mxu0 0.0
    %v300 = vand.u32 %v26, 4294901760
    %v301 = vsub.f32 %v26, %v300
    %302 = vmatpush1.msra.mxu0 %v301
    %303 = vmatprep.subr.mxu0 0.0
    %v304 = vand.u32 %v25, 4294901760
    %v305 = vsub.f32 %v25, %v304
    %306 = vmatpush1.msra.mxu0 %v305
    %307 = vmatprep.subr.mxu0 0.0
    %308 = vmatpush2.msra.mxu0 0.0
    %309 = vmatprep.subr.mxu0 0.0
    %310 = vmatpush2.msra.mxu0 0.0
    %311 = vmatprep.subr.mxu0 0.0
    %312 = vmatpush2.msra.mxu0 0.0
    %313 = vmatprep.subr.mxu0 0.0
    %314 = vmatpush2.msra.mxu0 0.0
    %315 = vmatprep.subr.mxu0 0.0
    %316 = vmatpush2.msra.mxu0 0.0
    %317 = vmatprep.subr.mxu0 0.0
    %318 = vmatpush2.msra.mxu0 0.0
    %319 = vmatprep.subr.mxu0 0.0
    %320 = vmatpush2.msra.mxu0 0.0
    %321 = vmatprep.subr.mxu0 0.0
    %322 = vmatpush2.msra.mxu0 0.0
    %323 = vmatprep.subr.mxu0 0.0
    %324 = vmatpush2.msra.mxu0 0.0
    %325 = vmatprep.subr.mxu0 0.0
    %326 = vmatpush2.msra.mxu0 0.0
    %327 = vmatprep.subr.mxu0 0.0
    %328 = vmatpush2.msra.mxu0 0.0
    %329 = vmatprep.subr.mxu0 0.0
    %330 = vmatpush2.msra.mxu0 0.0
    %331 = vmatprep.subr.mxu0 0.0
    %332 = vmatpush2.msra.mxu0 0.0
    %333 = vmatprep.subr.mxu0 0.0
    %334 = vmatpush2.msra.mxu0 0.0
    %335 = vmatprep.subr.mxu0 0.0
    %336 = vmatpush2.msra.mxu0 0.0
    %337 = vmatprep.subr.mxu0 0.0
    %338 = vmatpush2.msra.mxu0 0.0
    %339 = vmatprep.mubr.f32.mxu0 0.0
    %v340 = vand.u32 %v38, 4294901760
    %v341 = vsub.f32 %v38, %v340
    %342 = vmatmul.mubr.f32.gmra.mxu0 %v341
    %v343 = vpop.f32.mrf.mxu0
    %v344 = vadd.f32 %v246, %v343
    %v345 = vpop.f32.mrf.mxu0
    %346 = vmatprep.mubr.f32.mxu0 0.0
    %v347 = vand.u32 %v41, 4294901760
    %v348 = vsub.f32 %v41, %v347
    %349 = vmatmul.mubr.f32.gmra.mxu0 %v348
    %v350 = vpop.f32.mrf.mxu0
    %v351 = vadd.f32 %v252, %v350
    %v352 = vpop.f32.mrf.mxu0
    %353 = vmatprep.mubr.f32.mxu0 0.0
    %v354 = vand.u32 %v44, 4294901760
    %v355 = vsub.f32 %v44, %v354
    %356 = vmatmul.mubr.f32.gmra.mxu0 %v355
    %v357 = vpop.f32.mrf.mxu0
    %v358 = vadd.f32 %v258, %v357
    %v359 = vpop.f32.mrf.mxu0
    %360 = vmatprep.mubr.f32.mxu0 0.0
    %v361 = vand.u32 %v47, 4294901760
    %v362 = vsub.f32 %v47, %v361
    %363 = vmatmul.mubr.f32.gmra.mxu0 %v362
    %v364 = vpop.f32.mrf.mxu0
    %v365 = vadd.f32 %v264, %v364
    %v366 = vpop.f32.mrf.mxu0
    %367 = vdwg.mxu0
    %368 = vmatprep.subr.mxu0 0.0
    %369 = vmatpush1.msra.mxu0 0.0
    %370 = vmatprep.subr.mxu0 0.0
    %371 = vmatpush1.msra.mxu0 0.0
    %372 = vmatprep.subr.mxu0 0.0
    %373 = vmatpush1.msra.mxu0 0.0
    %374 = vmatprep.subr.mxu0 0.0
    %375 = vmatpush1.msra.mxu0 0.0
    %376 = vmatprep.subr.mxu0 0.0
    %377 = vmatpush1.msra.mxu0 0.0
    %378 = vmatprep.subr.mxu0 0.0
    %379 = vmatpush1.msra.mxu0 0.0
    %380 = vmatprep.subr.mxu0 0.0
    %381 = vmatpush1.msra.mxu0 0.0
    %382 = vmatprep.subr.mxu0 0.0
    %383 = vmatpush1.msra.mxu0 0.0
    %384 = vmatprep.subr.mxu0 0.0
    %385 = vmatpush1.msra.mxu0 0.0
    %386 = vmatprep.subr.mxu0 0.0
    %387 = vmatpush1.msra.mxu0 0.0
    %388 = vmatprep.subr.mxu0 0.0
    %389 = vmatpush1.msra.mxu0 0.0
    %390 = vmatprep.subr.mxu0 0.0
    %391 = vmatpush1.msra.mxu0 0.0
    %392 = vmatprep.subr.mxu0 0.0
    %v393 = vand.u32 %v28, 4294901760
    %394 = vmatpush1.msra.mxu0 %v393
    %395 = vmatprep.subr.mxu0 0.0
    %v396 = vand.u32 %v27, 4294901760
    %397 = vmatpush1.msra.mxu0 %v396
    %398 = vmatprep.subr.mxu0 0.0
    %v399 = vand.u32 %v26, 4294901760
    %400 = vmatpush1.msra.mxu0 %v399
    %401 = vmatprep.subr.mxu0 0.0
    %v402 = vand.u32 %v25, 4294901760
    %403 = vmatpush1.msra.mxu0 %v402
    %404 = vmatprep.subr.mxu0 0.0
    %405 = vmatpush2.msra.mxu0 0.0
    %406 = vmatprep.subr.mxu0 0.0
    %407 = vmatpush2.msra.mxu0 0.0
    %408 = vmatprep.subr.mxu0 0.0
    %409 = vmatpush2.msra.mxu0 0.0
    %410 = vmatprep.subr.mxu0 0.0
    %411 = vmatpush2.msra.mxu0 0.0
    %412 = vmatprep.subr.mxu0 0.0
    %413 = vmatpush2.msra.mxu0 0.0
    %414 = vmatprep.subr.mxu0 0.0
    %415 = vmatpush2.msra.mxu0 0.0
    %416 = vmatprep.subr.mxu0 0.0
    %417 = vmatpush2.msra.mxu0 0.0
    %418 = vmatprep.subr.mxu0 0.0
    %419 = vmatpush2.msra.mxu0 0.0
    %420 = vmatprep.subr.mxu0 0.0
    %421 = vmatpush2.msra.mxu0 0.0
    %422 = vmatprep.subr.mxu0 0.0
    %423 = vmatpush2.msra.mxu0 0.0
    %424 = vmatprep.subr.mxu0 0.0
    %425 = vmatpush2.msra.mxu0 0.0
    %426 = vmatprep.subr.mxu0 0.0
    %427 = vmatpush2.msra.mxu0 0.0
    %428 = vmatprep.subr.mxu0 0.0
    %429 = vmatpush2.msra.mxu0 0.0
    %430 = vmatprep.subr.mxu0 0.0
    %431 = vmatpush2.msra.mxu0 0.0
    %432 = vmatprep.subr.mxu0 0.0
    %433 = vmatpush2.msra.mxu0 0.0
    %434 = vmatprep.subr.mxu0 0.0
    %435 = vmatpush2.msra.mxu0 0.0
    %436 = vmatprep.mubr.f32.mxu0 0.0
    %v437 = vand.u32 %v38, 4294901760
    %v438 = vsub.f32 %v38, %v437
    %v439 = vand.u32 %v438, 4294901760
    %440 = vmatmul.mubr.f32.gmra.mxu0 %v439
    %v441 = vpop.f32.mrf.mxu0
    %v442 = vadd.f32 %v344, %v441
    %v443 = vpop.f32.mrf.mxu0
    %444 = vmatprep.mubr.f32.mxu0 0.0
    %v445 = vand.u32 %v41, 4294901760
    %v446 = vsub.f32 %v41, %v445
    %v447 = vand.u32 %v446, 4294901760
    %448 = vmatmul.mubr.f32.gmra.mxu0 %v447
    %v449 = vpop.f32.mrf.mxu0
    %v450 = vadd.f32 %v351, %v449
    %v451 = vpop.f32.mrf.mxu0
    %452 = vmatprep.mubr.f32.mxu0 0.0
    %v453 = vand.u32 %v44, 4294901760
    %v454 = vsub.f32 %v44, %v453
    %v455 = vand.u32 %v454, 4294901760
    %456 = vmatmul.mubr.f32.gmra.mxu0 %v455
    %v457 = vpop.f32.mrf.mxu0
    %v458 = vadd.f32 %v358, %v457
    %v459 = vpop.f32.mrf.mxu0
    %460 = vmatprep.mubr.f32.mxu0 0.0
    %v461 = vand.u32 %v47, 4294901760
    %v462 = vsub.f32 %v47, %v461
    %v463 = vand.u32 %v462, 4294901760
    %464 = vmatmul.mubr.f32.gmra.mxu0 %v463
    %v465 = vpop.f32.mrf.mxu0
    %v466 = vadd.f32 %v365, %v465
    %v467 = vpop.f32.mrf.mxu0
    %468 = vdwg.mxu0
    %469 = vmatprep.subr.mxu0 0.0
    %470 = vmatpush1.msra.mxu0 0.0
    %471 = vmatprep.subr.mxu0 0.0
    %472 = vmatpush1.msra.mxu0 0.0
    %473 = vmatprep.subr.mxu0 0.0
    %474 = vmatpush1.msra.mxu0 0.0
    %475 = vmatprep.subr.mxu0 0.0
    %476 = vmatpush1.msra.mxu0 0.0
    %477 = vmatprep.subr.mxu0 0.0
    %478 = vmatpush1.msra.mxu0 0.0
    %479 = vmatprep.subr.mxu0 0.0
    %480 = vmatpush1.msra.mxu0 0.0
    %481 = vmatprep.subr.mxu0 0.0
    %482 = vmatpush1.msra.mxu0 0.0
    %483 = vmatprep.subr.mxu0 0.0
    %484 = vmatpush1.msra.mxu0 0.0
    %485 = vmatprep.subr.mxu0 0.0
    %486 = vmatpush1.msra.mxu0 0.0
    %487 = vmatprep.subr.mxu0 0.0
    %488 = vmatpush1.msra.mxu0 0.0
    %489 = vmatprep.subr.mxu0 0.0
    %490 = vmatpush1.msra.mxu0 0.0
    %491 = vmatprep.subr.mxu0 0.0
    %492 = vmatpush1.msra.mxu0 0.0
    %493 = vmatprep.subr.mxu0 0.0
    %v494 = vand.u32 %v28, 4294901760
    %v495 = vsub.f32 %v28, %v494
    %v496 = vand.u32 %v495, 4294901760
    %497 = vmatpush1.msra.mxu0 %v496
    %498 = vmatprep.subr.mxu0 0.0
    %v499 = vand.u32 %v27, 4294901760
    %v500 = vsub.f32 %v27, %v499
    %v501 = vand.u32 %v500, 4294901760
    %502 = vmatpush1.msra.mxu0 %v501
    %503 = vmatprep.subr.mxu0 0.0
    %v504 = vand.u32 %v26, 4294901760
    %v505 = vsub.f32 %v26, %v504
    %v506 = vand.u32 %v505, 4294901760
    %507 = vmatpush1.msra.mxu0 %v506
    %508 = vmatprep.subr.mxu0 0.0
    %v509 = vand.u32 %v25, 4294901760
    %v510 = vsub.f32 %v25, %v509
    %v511 = vand.u32 %v510, 4294901760
    %512 = vmatpush1.msra.mxu0 %v511
    %513 = vmatprep.subr.mxu0 0.0
    %514 = vmatpush2.msra.mxu0 0.0
    %515 = vmatprep.subr.mxu0 0.0
    %516 = vmatpush2.msra.mxu0 0.0
    %517 = vmatprep.subr.mxu0 0.0
    %518 = vmatpush2.msra.mxu0 0.0
    %519 = vmatprep.subr.mxu0 0.0
    %520 = vmatpush2.msra.mxu0 0.0
    %521 = vmatprep.subr.mxu0 0.0
    %522 = vmatpush2.msra.mxu0 0.0
    %523 = vmatprep.subr.mxu0 0.0
    %524 = vmatpush2.msra.mxu0 0.0
    %525 = vmatprep.subr.mxu0 0.0
    %526 = vmatpush2.msra.mxu0 0.0
    %527 = vmatprep.subr.mxu0 0.0
    %528 = vmatpush2.msra.mxu0 0.0
    %529 = vmatprep.subr.mxu0 0.0
    %530 = vmatpush2.msra.mxu0 0.0
    %531 = vmatprep.subr.mxu0 0.0
    %532 = vmatpush2.msra.mxu0 0.0
    %533 = vmatprep.subr.mxu0 0.0
    %534 = vmatpush2.msra.mxu0 0.0
    %535 = vmatprep.subr.mxu0 0.0
    %536 = vmatpush2.msra.mxu0 0.0
    %537 = vmatprep.subr.mxu0 0.0
    %538 = vmatpush2.msra.mxu0 0.0
    %539 = vmatprep.subr.mxu0 0.0
    %540 = vmatpush2.msra.mxu0 0.0
    %541 = vmatprep.subr.mxu0 0.0
    %542 = vmatpush2.msra.mxu0 0.0
    %543 = vmatprep.subr.mxu0 0.0
    %544 = vmatpush2.msra.mxu0 0.0
    %545 = vmatprep.mubr.f32.mxu0 0.0
    %v546 = vand.u32 %v38, 4294901760
    %547 = vmatmul.mubr.f32.gmra.mxu0 %v546
    %v548 = vpop.f32.mrf.mxu0
    %v549 = vadd.f32 %v442, %v548
    %v550 = vpop.f32.mrf.mxu0
    %551 = vmatprep.mubr.f32.mxu0 0.0
    %v552 = vand.u32 %v41, 4294901760
    %553 = vmatmul.mubr.f32.gmra.mxu0 %v552
    %v554 = vpop.f32.mrf.mxu0
    %v555 = vadd.f32 %v450, %v554
    %v556 = vpop.f32.mrf.mxu0
    %557 = vmatprep.mubr.f32.mxu0 0.0
    %v558 = vand.u32 %v44, 4294901760
    %559 = vmatmul.mubr.f32.gmra.mxu0 %v558
    %v560 = vpop.f32.mrf.mxu0
    %v561 = vadd.f32 %v458, %v560
    %v562 = vpop.f32.mrf.mxu0
    %563 = vmatprep.mubr.f32.mxu0 0.0
    %v564 = vand.u32 %v47, 4294901760
    %565 = vmatmul.mubr.f32.gmra.mxu0 %v564
    %v566 = vpop.f32.mrf.mxu0
    %v567 = vadd.f32 %v466, %v566
    %v568 = vpop.f32.mrf.mxu0
    %569 = vdwg.mxu0
    %570 = vmatprep.subr.mxu0 0.0
    %571 = vmatpush1.msra.mxu0 0.0
    %572 = vmatprep.subr.mxu0 0.0
    %573 = vmatpush1.msra.mxu0 0.0
    %574 = vmatprep.subr.mxu0 0.0
    %575 = vmatpush1.msra.mxu0 0.0
    %576 = vmatprep.subr.mxu0 0.0
    %577 = vmatpush1.msra.mxu0 0.0
    %578 = vmatprep.subr.mxu0 0.0
    %579 = vmatpush1.msra.mxu0 0.0
    %580 = vmatprep.subr.mxu0 0.0
    %581 = vmatpush1.msra.mxu0 0.0
    %582 = vmatprep.subr.mxu0 0.0
    %583 = vmatpush1.msra.mxu0 0.0
    %584 = vmatprep.subr.mxu0 0.0
    %585 = vmatpush1.msra.mxu0 0.0
    %586 = vmatprep.subr.mxu0 0.0
    %587 = vmatpush1.msra.mxu0 0.0
    %588 = vmatprep.subr.mxu0 0.0
    %589 = vmatpush1.msra.mxu0 0.0
    %590 = vmatprep.subr.mxu0 0.0
    %591 = vmatpush1.msra.mxu0 0.0
    %592 = vmatprep.subr.mxu0 0.0
    %593 = vmatpush1.msra.mxu0 0.0
    %594 = vmatprep.subr.mxu0 0.0
    %v595 = vand.u32 %v28, 4294901760
    %596 = vmatpush1.msra.mxu0 %v595
    %597 = vmatprep.subr.mxu0 0.0
    %v598 = vand.u32 %v27, 4294901760
    %599 = vmatpush1.msra.mxu0 %v598
    %600 = vmatprep.subr.mxu0 0.0
    %v601 = vand.u32 %v26, 4294901760
    %602 = vmatpush1.msra.mxu0 %v601
    %603 = vmatprep.subr.mxu0 0.0
    %v604 = vand.u32 %v25, 4294901760
    %605 = vmatpush1.msra.mxu0 %v604
    %606 = vmatprep.subr.mxu0 0.0
    %607 = vmatpush2.msra.mxu0 0.0
    %608 = vmatprep.subr.mxu0 0.0
    %609 = vmatpush2.msra.mxu0 0.0
    %610 = vmatprep.subr.mxu0 0.0
    %611 = vmatpush2.msra.mxu0 0.0
    %612 = vmatprep.subr.mxu0 0.0
    %613 = vmatpush2.msra.mxu0 0.0
    %614 = vmatprep.subr.mxu0 0.0
    %615 = vmatpush2.msra.mxu0 0.0
    %616 = vmatprep.subr.mxu0 0.0
    %617 = vmatpush2.msra.mxu0 0.0
    %618 = vmatprep.subr.mxu0 0.0
    %619 = vmatpush2.msra.mxu0 0.0
    %620 = vmatprep.subr.mxu0 0.0
    %621 = vmatpush2.msra.mxu0 0.0
    %622 = vmatprep.subr.mxu0 0.0
    %623 = vmatpush2.msra.mxu0 0.0
    %624 = vmatprep.subr.mxu0 0.0
    %625 = vmatpush2.msra.mxu0 0.0
    %626 = vmatprep.subr.mxu0 0.0
    %627 = vmatpush2.msra.mxu0 0.0
    %628 = vmatprep.subr.mxu0 0.0
    %629 = vmatpush2.msra.mxu0 0.0
    %630 = vmatprep.subr.mxu0 0.0
    %631 = vmatpush2.msra.mxu0 0.0
    %632 = vmatprep.subr.mxu0 0.0
    %633 = vmatpush2.msra.mxu0 0.0
    %634 = vmatprep.subr.mxu0 0.0
    %635 = vmatpush2.msra.mxu0 0.0
    %636 = vmatprep.subr.mxu0 0.0
    %637 = vmatpush2.msra.mxu0 0.0
    %638 = vmatprep.mubr.f32.mxu0 0.0
    %v639 = vand.u32 %v38, 4294901760
    %640 = vmatmul.mubr.f32.gmra.mxu0 %v639
    %v641 = vpop.f32.mrf.mxu0
    %v642 = vadd.f32 %v549, %v641
    %v643 = vpop.f32.mrf.mxu0
    %644 = vmatprep.mubr.f32.mxu0 0.0
    %v645 = vand.u32 %v41, 4294901760
    %646 = vmatmul.mubr.f32.gmra.mxu0 %v645
    %v647 = vpop.f32.mrf.mxu0
    %v648 = vadd.f32 %v555, %v647
    %v649 = vpop.f32.mrf.mxu0
    %650 = vmatprep.mubr.f32.mxu0 0.0
    %v651 = vand.u32 %v44, 4294901760
    %652 = vmatmul.mubr.f32.gmra.mxu0 %v651
    %v653 = vpop.f32.mrf.mxu0
    %v654 = vadd.f32 %v561, %v653
    %v655 = vpop.f32.mrf.mxu0
    %656 = vmatprep.mubr.f32.mxu0 0.0
    %v657 = vand.u32 %v47, 4294901760
    %658 = vmatmul.mubr.f32.gmra.mxu0 %v657
    %v659 = vpop.f32.mrf.mxu0
    %v660 = vadd.f32 %v567, %v659
    %v661 = vpop.f32.mrf.mxu0
    %662 = vdwg.mxu0
    %v663 = vmul.f32 %v642, 0.5
    %v664 = vmul.f32 %v648, 0.5
    %v665 = vmul.f32 %v654, 0.5
    %v666 = vmul.f32 %v660, 0.5
    %v667 = vmul.f32 %v642, 0.70710677
    %v668 = vmul.f32 %v648, 0.70710677
    %v669 = vmul.f32 %v654, 0.70710677
    %v670 = vmul.f32 %v660, 0.70710677
    %v671 = verf.f32.pop %v667
    %v672 = verf.f32.pop %v668
    %v673 = verf.f32.pop %v669
    %v674 = verf.f32.pop %v670
    %v675 = vadd.f32 %v671, 1.0
    %v676 = vadd.f32 %v672, 1.0
    %v677 = vadd.f32 %v673, 1.0
    %v678 = vadd.f32 %v674, 1.0
    %v679 = vmul.f32 %v663, %v675
    %v680 = vmul.f32 %v664, %v676
    %v681 = vmul.f32 %v665, %v677
    %v682 = vmul.f32 %v666, %v678
    %v683 = vld [vmem:[%s3] sm:$0xff]
    %v684 = vld [vmem:[%s3 + $0x8] sm:$0xff]
    %v685 = vld [vmem:[%s3 + $0x10] sm:$0xff]
    %v686 = vld [vmem:[%s3 + $0x18] sm:$0xff]
    %v687 = vld [vmem:[%s3 + $0x20] sm:$0xff]
    %v688 = vld [vmem:[%s3 + $0x28] sm:$0xff]
    %v689 = vld [vmem:[%s3 + $0x30] sm:$0xff]
    %v690 = vld [vmem:[%s3 + $0x38] sm:$0xff]
    %v691 = vld [vmem:[%s4] sm:$0x1]
    %v693 = vlaneseq
    %v694 = vshrl.u32 %v693, 7
    %v695 = vsub.s32 0, %v694
    %v696 = vrot.slane %v691, %v695
    %vm698 = vcmask 523264
    %v700 = vsel %vm698, %v679, 0
    %v703 = vsel %vm698, %v680, 0
    %v706 = vsel %vm698, %v681, 0
    %v709 = vsel %vm698, %v682, 0
    %711 = vmatprep.subr.mxu0 0.0
    %712 = vmatpush1.msra.mxu0 0.0
    %713 = vmatprep.subr.mxu0 0.0
    %714 = vmatpush1.msra.mxu0 0.0
    %715 = vmatprep.subr.mxu0 0.0
    %716 = vmatpush1.msra.mxu0 0.0
    %717 = vmatprep.subr.mxu0 0.0
    %718 = vmatpush1.msra.mxu0 0.0
    %719 = vmatprep.subr.mxu0 0.0
    %720 = vmatpush1.msra.mxu0 0.0
    %721 = vmatprep.subr.mxu0 0.0
    %722 = vmatpush1.msra.mxu0 0.0
    %723 = vmatprep.subr.mxu0 0.0
    %724 = vmatpush1.msra.mxu0 0.0
    %725 = vmatprep.subr.mxu0 0.0
    %726 = vmatpush1.msra.mxu0 0.0
    %727 = vmatprep.subr.mxu0 0.0
    %v728 = vand.u32 %v690, 4294901760
    %729 = vmatpush1.msra.mxu0 %v728
    %730 = vmatprep.subr.mxu0 0.0
    %v731 = vand.u32 %v689, 4294901760
    %732 = vmatpush1.msra.mxu0 %v731
    %733 = vmatprep.subr.mxu0 0.0
    %v734 = vand.u32 %v688, 4294901760
    %735 = vmatpush1.msra.mxu0 %v734
    %736 = vmatprep.subr.mxu0 0.0
    %v737 = vand.u32 %v687, 4294901760
    %738 = vmatpush1.msra.mxu0 %v737
    %739 = vmatprep.subr.mxu0 0.0
    %v740 = vand.u32 %v686, 4294901760
    %741 = vmatpush1.msra.mxu0 %v740
    %742 = vmatprep.subr.mxu0 0.0
    %v743 = vand.u32 %v685, 4294901760
    %744 = vmatpush1.msra.mxu0 %v743
    %745 = vmatprep.subr.mxu0 0.0
    %v746 = vand.u32 %v684, 4294901760
    %747 = vmatpush1.msra.mxu0 %v746
    %748 = vmatprep.subr.mxu0 0.0
    %v749 = vand.u32 %v683, 4294901760
    %750 = vmatpush1.msra.mxu0 %v749
    %751 = vmatprep.subr.mxu0 0.0
    %752 = vmatpush2.msra.mxu0 0.0
    %753 = vmatprep.subr.mxu0 0.0
    %754 = vmatpush2.msra.mxu0 0.0
    %755 = vmatprep.subr.mxu0 0.0
    %756 = vmatpush2.msra.mxu0 0.0
    %757 = vmatprep.subr.mxu0 0.0
    %758 = vmatpush2.msra.mxu0 0.0
    %759 = vmatprep.subr.mxu0 0.0
    %760 = vmatpush2.msra.mxu0 0.0
    %761 = vmatprep.subr.mxu0 0.0
    %762 = vmatpush2.msra.mxu0 0.0
    %763 = vmatprep.subr.mxu0 0.0
    %764 = vmatpush2.msra.mxu0 0.0
    %765 = vmatprep.subr.mxu0 0.0
    %766 = vmatpush2.msra.mxu0 0.0
    %767 = vmatprep.subr.mxu0 0.0
    %768 = vmatpush2.msra.mxu0 0.0
    %769 = vmatprep.subr.mxu0 0.0
    %770 = vmatpush2.msra.mxu0 0.0
    %771 = vmatprep.subr.mxu0 0.0
    %772 = vmatpush2.msra.mxu0 0.0
    %773 = vmatprep.subr.mxu0 0.0
    %774 = vmatpush2.msra.mxu0 0.0
    %775 = vmatprep.subr.mxu0 0.0
    %776 = vmatpush2.msra.mxu0 0.0
    %777 = vmatprep.subr.mxu0 0.0
    %778 = vmatpush2.msra.mxu0 0.0
    %779 = vmatprep.subr.mxu0 0.0
    %780 = vmatpush2.msra.mxu0 0.0
    %781 = vmatprep.subr.mxu0 0.0
    %782 = vmatpush2.msra.mxu0 0.0
    %783 = vmatprep.mubr.f32.mxu0 0.0
    %v784 = vand.u32 %v700, 4294901760
    %v785 = vsub.f32 %v700, %v784
    %v786 = vand.u32 %v785, 4294901760
    %v787 = vsub.f32 %v785, %v786
    %v788 = vand.u32 %v787, 4294901760
    %789 = vmatmul.mubr.f32.gmra.mxu0 %v788
    %v790 = vpop.f32.mrf.mxu0
    %v791 = vadd.f32 %v696, %v790
    %v792 = vpop.f32.mrf.mxu0
    %793 = vmatprep.mubr.f32.mxu0 0.0
    %v794 = vand.u32 %v703, 4294901760
    %v795 = vsub.f32 %v703, %v794
    %v796 = vand.u32 %v795, 4294901760
    %v797 = vsub.f32 %v795, %v796
    %v798 = vand.u32 %v797, 4294901760
    %799 = vmatmul.mubr.f32.gmra.mxu0 %v798
    %v800 = vpop.f32.mrf.mxu0
    %v801 = vadd.f32 %v696, %v800
    %v802 = vpop.f32.mrf.mxu0
    %803 = vmatprep.mubr.f32.mxu0 0.0
    %v804 = vand.u32 %v706, 4294901760
    %v805 = vsub.f32 %v706, %v804
    %v806 = vand.u32 %v805, 4294901760
    %v807 = vsub.f32 %v805, %v806
    %v808 = vand.u32 %v807, 4294901760
    %809 = vmatmul.mubr.f32.gmra.mxu0 %v808
    %v810 = vpop.f32.mrf.mxu0
    %v811 = vadd.f32 %v696, %v810
    %v812 = vpop.f32.mrf.mxu0
    %813 = vmatprep.mubr.f32.mxu0 0.0
    %v814 = vand.u32 %v709, 4294901760
    %v815 = vsub.f32 %v709, %v814
    %v816 = vand.u32 %v815, 4294901760
    %v817 = vsub.f32 %v815, %v816
    %v818 = vand.u32 %v817, 4294901760
    %819 = vmatmul.mubr.f32.gmra.mxu0 %v818
    %v820 = vpop.f32.mrf.mxu0
    %v821 = vadd.f32 %v696, %v820
    %v822 = vpop.f32.mrf.mxu0
    %823 = vdwg.mxu0
    %824 = vmatprep.subr.mxu0 0.0
    %825 = vmatpush1.msra.mxu0 0.0
    %826 = vmatprep.subr.mxu0 0.0
    %827 = vmatpush1.msra.mxu0 0.0
    %828 = vmatprep.subr.mxu0 0.0
    %829 = vmatpush1.msra.mxu0 0.0
    %830 = vmatprep.subr.mxu0 0.0
    %831 = vmatpush1.msra.mxu0 0.0
    %832 = vmatprep.subr.mxu0 0.0
    %833 = vmatpush1.msra.mxu0 0.0
    %834 = vmatprep.subr.mxu0 0.0
    %835 = vmatpush1.msra.mxu0 0.0
    %836 = vmatprep.subr.mxu0 0.0
    %837 = vmatpush1.msra.mxu0 0.0
    %838 = vmatprep.subr.mxu0 0.0
    %839 = vmatpush1.msra.mxu0 0.0
    %840 = vmatprep.subr.mxu0 0.0
    %v841 = vand.u32 %v690, 4294901760
    %v842 = vsub.f32 %v690, %v841
    %v843 = vand.u32 %v842, 4294901760
    %v844 = vsub.f32 %v842, %v843
    %v845 = vand.u32 %v844, 4294901760
    %846 = vmatpush1.msra.mxu0 %v845
    %847 = vmatprep.subr.mxu0 0.0
    %v848 = vand.u32 %v689, 4294901760
    %v849 = vsub.f32 %v689, %v848
    %v850 = vand.u32 %v849, 4294901760
    %v851 = vsub.f32 %v849, %v850
    %v852 = vand.u32 %v851, 4294901760
    %853 = vmatpush1.msra.mxu0 %v852
    %854 = vmatprep.subr.mxu0 0.0
    %v855 = vand.u32 %v688, 4294901760
    %v856 = vsub.f32 %v688, %v855
    %v857 = vand.u32 %v856, 4294901760
    %v858 = vsub.f32 %v856, %v857
    %v859 = vand.u32 %v858, 4294901760
    %860 = vmatpush1.msra.mxu0 %v859
    %861 = vmatprep.subr.mxu0 0.0
    %v862 = vand.u32 %v687, 4294901760
    %v863 = vsub.f32 %v687, %v862
    %v864 = vand.u32 %v863, 4294901760
    %v865 = vsub.f32 %v863, %v864
    %v866 = vand.u32 %v865, 4294901760
    %867 = vmatpush1.msra.mxu0 %v866
    %868 = vmatprep.subr.mxu0 0.0
    %v869 = vand.u32 %v686, 4294901760
    %v870 = vsub.f32 %v686, %v869
    %v871 = vand.u32 %v870, 4294901760
    %v872 = vsub.f32 %v870, %v871
    %v873 = vand.u32 %v872, 4294901760
    %874 = vmatpush1.msra.mxu0 %v873
    %875 = vmatprep.subr.mxu0 0.0
    %v876 = vand.u32 %v685, 4294901760
    %v877 = vsub.f32 %v685, %v876
    %v878 = vand.u32 %v877, 4294901760
    %v879 = vsub.f32 %v877, %v878
    %v880 = vand.u32 %v879, 4294901760
    %881 = vmatpush1.msra.mxu0 %v880
    %882 = vmatprep.subr.mxu0 0.0
    %v883 = vand.u32 %v684, 4294901760
    %v884 = vsub.f32 %v684, %v883
    %v885 = vand.u32 %v884, 4294901760
    %v886 = vsub.f32 %v884, %v885
    %v887 = vand.u32 %v886, 4294901760
    %888 = vmatpush1.msra.mxu0 %v887
    %889 = vmatprep.subr.mxu0 0.0
    %v890 = vand.u32 %v683, 4294901760
    %v891 = vsub.f32 %v683, %v890
    %v892 = vand.u32 %v891, 4294901760
    %v893 = vsub.f32 %v891, %v892
    %v894 = vand.u32 %v893, 4294901760
    %895 = vmatpush1.msra.mxu0 %v894
    %896 = vmatprep.subr.mxu0 0.0
    %897 = vmatpush2.msra.mxu0 0.0
    %898 = vmatprep.subr.mxu0 0.0
    %899 = vmatpush2.msra.mxu0 0.0
    %900 = vmatprep.subr.mxu0 0.0
    %901 = vmatpush2.msra.mxu0 0.0
    %902 = vmatprep.subr.mxu0 0.0
    %903 = vmatpush2.msra.mxu0 0.0
    %904 = vmatprep.subr.mxu0 0.0
    %905 = vmatpush2.msra.mxu0 0.0
    %906 = vmatprep.subr.mxu0 0.0
    %907 = vmatpush2.msra.mxu0 0.0
    %908 = vmatprep.subr.mxu0 0.0
    %909 = vmatpush2.msra.mxu0 0.0
    %910 = vmatprep.subr.mxu0 0.0
    %911 = vmatpush2.msra.mxu0 0.0
    %912 = vmatprep.subr.mxu0 0.0
    %913 = vmatpush2.msra.mxu0 0.0
    %914 = vmatprep.subr.mxu0 0.0
    %915 = vmatpush2.msra.mxu0 0.0
    %916 = vmatprep.subr.mxu0 0.0
    %917 = vmatpush2.msra.mxu0 0.0
    %918 = vmatprep.subr.mxu0 0.0
    %919 = vmatpush2.msra.mxu0 0.0
    %920 = vmatprep.subr.mxu0 0.0
    %921 = vmatpush2.msra.mxu0 0.0
    %922 = vmatprep.subr.mxu0 0.0
    %923 = vmatpush2.msra.mxu0 0.0
    %924 = vmatprep.subr.mxu0 0.0
    %925 = vmatpush2.msra.mxu0 0.0
    %926 = vmatprep.subr.mxu0 0.0
    %927 = vmatpush2.msra.mxu0 0.0
    %928 = vmatprep.mubr.f32.mxu0 0.0
    %v929 = vand.u32 %v700, 4294901760
    %930 = vmatmul.mubr.f32.gmra.mxu0 %v929
    %v931 = vpop.f32.mrf.mxu0
    %v932 = vadd.f32 %v791, %v931
    %v933 = vpop.f32.mrf.mxu0
    %934 = vmatprep.mubr.f32.mxu0 0.0
    %v935 = vand.u32 %v703, 4294901760
    %936 = vmatmul.mubr.f32.gmra.mxu0 %v935
    %v937 = vpop.f32.mrf.mxu0
    %v938 = vadd.f32 %v801, %v937
    %v939 = vpop.f32.mrf.mxu0
    %940 = vmatprep.mubr.f32.mxu0 0.0
    %v941 = vand.u32 %v706, 4294901760
    %942 = vmatmul.mubr.f32.gmra.mxu0 %v941
    %v943 = vpop.f32.mrf.mxu0
    %v944 = vadd.f32 %v811, %v943
    %v945 = vpop.f32.mrf.mxu0
    %946 = vmatprep.mubr.f32.mxu0 0.0
    %v947 = vand.u32 %v709, 4294901760
    %948 = vmatmul.mubr.f32.gmra.mxu0 %v947
    %v949 = vpop.f32.mrf.mxu0
    %v950 = vadd.f32 %v821, %v949
    %v951 = vpop.f32.mrf.mxu0
    %952 = vdwg.mxu0
    %953 = vmatprep.subr.mxu0 0.0
    %954 = vmatpush1.msra.mxu0 0.0
    %955 = vmatprep.subr.mxu0 0.0
    %956 = vmatpush1.msra.mxu0 0.0
    %957 = vmatprep.subr.mxu0 0.0
    %958 = vmatpush1.msra.mxu0 0.0
    %959 = vmatprep.subr.mxu0 0.0
    %960 = vmatpush1.msra.mxu0 0.0
    %961 = vmatprep.subr.mxu0 0.0
    %962 = vmatpush1.msra.mxu0 0.0
    %963 = vmatprep.subr.mxu0 0.0
    %964 = vmatpush1.msra.mxu0 0.0
    %965 = vmatprep.subr.mxu0 0.0
    %966 = vmatpush1.msra.mxu0 0.0
    %967 = vmatprep.subr.mxu0 0.0
    %968 = vmatpush1.msra.mxu0 0.0
    %969 = vmatprep.subr.mxu0 0.0
    %v970 = vand.u32 %v690, 4294901760
    %v971 = vsub.f32 %v690, %v970
    %972 = vmatpush1.msra.mxu0 %v971
    %973 = vmatprep.subr.mxu0 0.0
    %v974 = vand.u32 %v689, 4294901760
    %v975 = vsub.f32 %v689, %v974
    %976 = vmatpush1.msra.mxu0 %v975
    %977 = vmatprep.subr.mxu0 0.0
    %v978 = vand.u32 %v688, 4294901760
    %v979 = vsub.f32 %v688, %v978
    %980 = vmatpush1.msra.mxu0 %v979
    %981 = vmatprep.subr.mxu0 0.0
    %v982 = vand.u32 %v687, 4294901760
    %v983 = vsub.f32 %v687, %v982
    %984 = vmatpush1.msra.mxu0 %v983
    %985 = vmatprep.subr.mxu0 0.0
    %v986 = vand.u32 %v686, 4294901760
    %v987 = vsub.f32 %v686, %v986
    %988 = vmatpush1.msra.mxu0 %v987
    %989 = vmatprep.subr.mxu0 0.0
    %v990 = vand.u32 %v685, 4294901760
    %v991 = vsub.f32 %v685, %v990
    %992 = vmatpush1.msra.mxu0 %v991
    %993 = vmatprep.subr.mxu0 0.0
    %v994 = vand.u32 %v684, 4294901760
    %v995 = vsub.f32 %v684, %v994
    %996 = vmatpush1.msra.mxu0 %v995
    %997 = vmatprep.subr.mxu0 0.0
    %v998 = vand.u32 %v683, 4294901760
    %v999 = vsub.f32 %v683, %v998
    %1000 = vmatpush1.msra.mxu0 %v999
    %1001 = vmatprep.subr.mxu0 0.0
    %1002 = vmatpush2.msra.mxu0 0.0
    %1003 = vmatprep.subr.mxu0 0.0
    %1004 = vmatpush2.msra.mxu0 0.0
    %1005 = vmatprep.subr.mxu0 0.0
    %1006 = vmatpush2.msra.mxu0 0.0
    %1007 = vmatprep.subr.mxu0 0.0
    %1008 = vmatpush2.msra.mxu0 0.0
    %1009 = vmatprep.subr.mxu0 0.0
    %1010 = vmatpush2.msra.mxu0 0.0
    %1011 = vmatprep.subr.mxu0 0.0
    %1012 = vmatpush2.msra.mxu0 0.0
    %1013 = vmatprep.subr.mxu0 0.0
    %1014 = vmatpush2.msra.mxu0 0.0
    %1015 = vmatprep.subr.mxu0 0.0
    %1016 = vmatpush2.msra.mxu0 0.0
    %1017 = vmatprep.subr.mxu0 0.0
    %1018 = vmatpush2.msra.mxu0 0.0
    %1019 = vmatprep.subr.mxu0 0.0
    %1020 = vmatpush2.msra.mxu0 0.0
    %1021 = vmatprep.subr.mxu0 0.0
    %1022 = vmatpush2.msra.mxu0 0.0
    %1023 = vmatprep.subr.mxu0 0.0
    %1024 = vmatpush2.msra.mxu0 0.0
    %1025 = vmatprep.subr.mxu0 0.0
    %1026 = vmatpush2.msra.mxu0 0.0
    %1027 = vmatprep.subr.mxu0 0.0
    %1028 = vmatpush2.msra.mxu0 0.0
    %1029 = vmatprep.subr.mxu0 0.0
    %1030 = vmatpush2.msra.mxu0 0.0
    %1031 = vmatprep.subr.mxu0 0.0
    %1032 = vmatpush2.msra.mxu0 0.0
    %1033 = vmatprep.mubr.f32.mxu0 0.0
    %v1034 = vand.u32 %v700, 4294901760
    %v1035 = vsub.f32 %v700, %v1034
    %1036 = vmatmul.mubr.f32.gmra.mxu0 %v1035
    %v1037 = vpop.f32.mrf.mxu0
    %v1038 = vadd.f32 %v932, %v1037
    %v1039 = vpop.f32.mrf.mxu0
    %1040 = vmatprep.mubr.f32.mxu0 0.0
    %v1041 = vand.u32 %v703, 4294901760
    %v1042 = vsub.f32 %v703, %v1041
    %1043 = vmatmul.mubr.f32.gmra.mxu0 %v1042
    %v1044 = vpop.f32.mrf.mxu0
    %v1045 = vadd.f32 %v938, %v1044
    %v1046 = vpop.f32.mrf.mxu0
    %1047 = vmatprep.mubr.f32.mxu0 0.0
    %v1048 = vand.u32 %v706, 4294901760
    %v1049 = vsub.f32 %v706, %v1048
    %1050 = vmatmul.mubr.f32.gmra.mxu0 %v1049
    %v1051 = vpop.f32.mrf.mxu0
    %v1052 = vadd.f32 %v944, %v1051
    %v1053 = vpop.f32.mrf.mxu0
    %1054 = vmatprep.mubr.f32.mxu0 0.0
    %v1055 = vand.u32 %v709, 4294901760
    %v1056 = vsub.f32 %v709, %v1055
    %1057 = vmatmul.mubr.f32.gmra.mxu0 %v1056
    %v1058 = vpop.f32.mrf.mxu0
    %v1059 = vadd.f32 %v950, %v1058
    %v1060 = vpop.f32.mrf.mxu0
    %1061 = vdwg.mxu0
    %1062 = vmatprep.subr.mxu0 0.0
    %1063 = vmatpush1.msra.mxu0 0.0
    %1064 = vmatprep.subr.mxu0 0.0
    %1065 = vmatpush1.msra.mxu0 0.0
    %1066 = vmatprep.subr.mxu0 0.0
    %1067 = vmatpush1.msra.mxu0 0.0
    %1068 = vmatprep.subr.mxu0 0.0
    %1069 = vmatpush1.msra.mxu0 0.0
    %1070 = vmatprep.subr.mxu0 0.0
    %1071 = vmatpush1.msra.mxu0 0.0
    %1072 = vmatprep.subr.mxu0 0.0
    %1073 = vmatpush1.msra.mxu0 0.0
    %1074 = vmatprep.subr.mxu0 0.0
    %1075 = vmatpush1.msra.mxu0 0.0
    %1076 = vmatprep.subr.mxu0 0.0
    %1077 = vmatpush1.msra.mxu0 0.0
    %1078 = vmatprep.subr.mxu0 0.0
    %v1079 = vand.u32 %v690, 4294901760
    %1080 = vmatpush1.msra.mxu0 %v1079
    %1081 = vmatprep.subr.mxu0 0.0
    %v1082 = vand.u32 %v689, 4294901760
    %1083 = vmatpush1.msra.mxu0 %v1082
    %1084 = vmatprep.subr.mxu0 0.0
    %v1085 = vand.u32 %v688, 4294901760
    %1086 = vmatpush1.msra.mxu0 %v1085
    %1087 = vmatprep.subr.mxu0 0.0
    %v1088 = vand.u32 %v687, 4294901760
    %1089 = vmatpush1.msra.mxu0 %v1088
    %1090 = vmatprep.subr.mxu0 0.0
    %v1091 = vand.u32 %v686, 4294901760
    %1092 = vmatpush1.msra.mxu0 %v1091
    %1093 = vmatprep.subr.mxu0 0.0
    %v1094 = vand.u32 %v685, 4294901760
    %1095 = vmatpush1.msra.mxu0 %v1094
    %1096 = vmatprep.subr.mxu0 0.0
    %v1097 = vand.u32 %v684, 4294901760
    %1098 = vmatpush1.msra.mxu0 %v1097
    %1099 = vmatprep.subr.mxu0 0.0
    %v1100 = vand.u32 %v683, 4294901760
    %1101 = vmatpush1.msra.mxu0 %v1100
    %1102 = vmatprep.subr.mxu0 0.0
    %1103 = vmatpush2.msra.mxu0 0.0
    %1104 = vmatprep.subr.mxu0 0.0
    %1105 = vmatpush2.msra.mxu0 0.0
    %1106 = vmatprep.subr.mxu0 0.0
    %1107 = vmatpush2.msra.mxu0 0.0
    %1108 = vmatprep.subr.mxu0 0.0
    %1109 = vmatpush2.msra.mxu0 0.0
    %1110 = vmatprep.subr.mxu0 0.0
    %1111 = vmatpush2.msra.mxu0 0.0
    %1112 = vmatprep.subr.mxu0 0.0
    %1113 = vmatpush2.msra.mxu0 0.0
    %1114 = vmatprep.subr.mxu0 0.0
    %1115 = vmatpush2.msra.mxu0 0.0
    %1116 = vmatprep.subr.mxu0 0.0
    %1117 = vmatpush2.msra.mxu0 0.0
    %1118 = vmatprep.subr.mxu0 0.0
    %1119 = vmatpush2.msra.mxu0 0.0
    %1120 = vmatprep.subr.mxu0 0.0
    %1121 = vmatpush2.msra.mxu0 0.0
    %1122 = vmatprep.subr.mxu0 0.0
    %1123 = vmatpush2.msra.mxu0 0.0
    %1124 = vmatprep.subr.mxu0 0.0
    %1125 = vmatpush2.msra.mxu0 0.0
    %1126 = vmatprep.subr.mxu0 0.0
    %1127 = vmatpush2.msra.mxu0 0.0
    %1128 = vmatprep.subr.mxu0 0.0
    %1129 = vmatpush2.msra.mxu0 0.0
    %1130 = vmatprep.subr.mxu0 0.0
    %1131 = vmatpush2.msra.mxu0 0.0
    %1132 = vmatprep.subr.mxu0 0.0
    %1133 = vmatpush2.msra.mxu0 0.0
    %1134 = vmatprep.mubr.f32.mxu0 0.0
    %v1135 = vand.u32 %v700, 4294901760
    %v1136 = vsub.f32 %v700, %v1135
    %v1137 = vand.u32 %v1136, 4294901760
    %1138 = vmatmul.mubr.f32.gmra.mxu0 %v1137
    %v1139 = vpop.f32.mrf.mxu0
    %v1140 = vadd.f32 %v1038, %v1139
    %v1141 = vpop.f32.mrf.mxu0
    %1142 = vmatprep.mubr.f32.mxu0 0.0
    %v1143 = vand.u32 %v703, 4294901760
    %v1144 = vsub.f32 %v703, %v1143
    %v1145 = vand.u32 %v1144, 4294901760
    %1146 = vmatmul.mubr.f32.gmra.mxu0 %v1145
    %v1147 = vpop.f32.mrf.mxu0
    %v1148 = vadd.f32 %v1045, %v1147
    %v1149 = vpop.f32.mrf.mxu0
    %1150 = vmatprep.mubr.f32.mxu0 0.0
    %v1151 = vand.u32 %v706, 4294901760
    %v1152 = vsub.f32 %v706, %v1151
    %v1153 = vand.u32 %v1152, 4294901760
    %1154 = vmatmul.mubr.f32.gmra.mxu0 %v1153
    %v1155 = vpop.f32.mrf.mxu0
    %v1156 = vadd.f32 %v1052, %v1155
    %v1157 = vpop.f32.mrf.mxu0
    %1158 = vmatprep.mubr.f32.mxu0 0.0
    %v1159 = vand.u32 %v709, 4294901760
    %v1160 = vsub.f32 %v709, %v1159
    %v1161 = vand.u32 %v1160, 4294901760
    %1162 = vmatmul.mubr.f32.gmra.mxu0 %v1161
    %v1163 = vpop.f32.mrf.mxu0
    %v1164 = vadd.f32 %v1059, %v1163
    %v1165 = vpop.f32.mrf.mxu0
    %1166 = vdwg.mxu0
    %1167 = vmatprep.subr.mxu0 0.0
    %1168 = vmatpush1.msra.mxu0 0.0
    %1169 = vmatprep.subr.mxu0 0.0
    %1170 = vmatpush1.msra.mxu0 0.0
    %1171 = vmatprep.subr.mxu0 0.0
    %1172 = vmatpush1.msra.mxu0 0.0
    %1173 = vmatprep.subr.mxu0 0.0
    %1174 = vmatpush1.msra.mxu0 0.0
    %1175 = vmatprep.subr.mxu0 0.0
    %1176 = vmatpush1.msra.mxu0 0.0
    %1177 = vmatprep.subr.mxu0 0.0
    %1178 = vmatpush1.msra.mxu0 0.0
    %1179 = vmatprep.subr.mxu0 0.0
    %1180 = vmatpush1.msra.mxu0 0.0
    %1181 = vmatprep.subr.mxu0 0.0
    %1182 = vmatpush1.msra.mxu0 0.0
    %1183 = vmatprep.subr.mxu0 0.0
    %v1184 = vand.u32 %v690, 4294901760
    %v1185 = vsub.f32 %v690, %v1184
    %v1186 = vand.u32 %v1185, 4294901760
    %1187 = vmatpush1.msra.mxu0 %v1186
    %1188 = vmatprep.subr.mxu0 0.0
    %v1189 = vand.u32 %v689, 4294901760
    %v1190 = vsub.f32 %v689, %v1189
    %v1191 = vand.u32 %v1190, 4294901760
    %1192 = vmatpush1.msra.mxu0 %v1191
    %1193 = vmatprep.subr.mxu0 0.0
    %v1194 = vand.u32 %v688, 4294901760
    %v1195 = vsub.f32 %v688, %v1194
    %v1196 = vand.u32 %v1195, 4294901760
    %1197 = vmatpush1.msra.mxu0 %v1196
    %1198 = vmatprep.subr.mxu0 0.0
    %v1199 = vand.u32 %v687, 4294901760
    %v1200 = vsub.f32 %v687, %v1199
    %v1201 = vand.u32 %v1200, 4294901760
    %1202 = vmatpush1.msra.mxu0 %v1201
    %1203 = vmatprep.subr.mxu0 0.0
    %v1204 = vand.u32 %v686, 4294901760
    %v1205 = vsub.f32 %v686, %v1204
    %v1206 = vand.u32 %v1205, 4294901760
    %1207 = vmatpush1.msra.mxu0 %v1206
    %1208 = vmatprep.subr.mxu0 0.0
    %v1209 = vand.u32 %v685, 4294901760
    %v1210 = vsub.f32 %v685, %v1209
    %v1211 = vand.u32 %v1210, 4294901760
    %1212 = vmatpush1.msra.mxu0 %v1211
    %1213 = vmatprep.subr.mxu0 0.0
    %v1214 = vand.u32 %v684, 4294901760
    %v1215 = vsub.f32 %v684, %v1214
    %v1216 = vand.u32 %v1215, 4294901760
    %1217 = vmatpush1.msra.mxu0 %v1216
    %1218 = vmatprep.subr.mxu0 0.0
    %v1219 = vand.u32 %v683, 4294901760
    %v1220 = vsub.f32 %v683, %v1219
    %v1221 = vand.u32 %v1220, 4294901760
    %1222 = vmatpush1.msra.mxu0 %v1221
    %1223 = vmatprep.subr.mxu0 0.0
    %1224 = vmatpush2.msra.mxu0 0.0
    %1225 = vmatprep.subr.mxu0 0.0
    %1226 = vmatpush2.msra.mxu0 0.0
    %1227 = vmatprep.subr.mxu0 0.0
    %1228 = vmatpush2.msra.mxu0 0.0
    %1229 = vmatprep.subr.mxu0 0.0
    %1230 = vmatpush2.msra.mxu0 0.0
    %1231 = vmatprep.subr.mxu0 0.0
    %1232 = vmatpush2.msra.mxu0 0.0
    %1233 = vmatprep.subr.mxu0 0.0
    %1234 = vmatpush2.msra.mxu0 0.0
    %1235 = vmatprep.subr.mxu0 0.0
    %1236 = vmatpush2.msra.mxu0 0.0
    %1237 = vmatprep.subr.mxu0 0.0
    %1238 = vmatpush2.msra.mxu0 0.0
    %1239 = vmatprep.subr.mxu0 0.0
    %1240 = vmatpush2.msra.mxu0 0.0
    %1241 = vmatprep.subr.mxu0 0.0
    %1242 = vmatpush2.msra.mxu0 0.0
    %1243 = vmatprep.subr.mxu0 0.0
    %1244 = vmatpush2.msra.mxu0 0.0
    %1245 = vmatprep.subr.mxu0 0.0
    %1246 = vmatpush2.msra.mxu0 0.0
    %1247 = vmatprep.subr.mxu0 0.0
    %1248 = vmatpush2.msra.mxu0 0.0
    %1249 = vmatprep.subr.mxu0 0.0
    %1250 = vmatpush2.msra.mxu0 0.0
    %1251 = vmatprep.subr.mxu0 0.0
    %1252 = vmatpush2.msra.mxu0 0.0
    %1253 = vmatprep.subr.mxu0 0.0
    %1254 = vmatpush2.msra.mxu0 0.0
    %1255 = vmatprep.mubr.f32.mxu0 0.0
    %v1256 = vand.u32 %v700, 4294901760
    %1257 = vmatmul.mubr.f32.gmra.mxu0 %v1256
    %v1258 = vpop.f32.mrf.mxu0
    %v1259 = vadd.f32 %v1140, %v1258
    %v1260 = vpop.f32.mrf.mxu0
    %1261 = vmatprep.mubr.f32.mxu0 0.0
    %v1262 = vand.u32 %v703, 4294901760
    %1263 = vmatmul.mubr.f32.gmra.mxu0 %v1262
    %v1264 = vpop.f32.mrf.mxu0
    %v1265 = vadd.f32 %v1148, %v1264
    %v1266 = vpop.f32.mrf.mxu0
    %1267 = vmatprep.mubr.f32.mxu0 0.0
    %v1268 = vand.u32 %v706, 4294901760
    %1269 = vmatmul.mubr.f32.gmra.mxu0 %v1268
    %v1270 = vpop.f32.mrf.mxu0
    %v1271 = vadd.f32 %v1156, %v1270
    %v1272 = vpop.f32.mrf.mxu0
    %1273 = vmatprep.mubr.f32.mxu0 0.0
    %v1274 = vand.u32 %v709, 4294901760
    %1275 = vmatmul.mubr.f32.gmra.mxu0 %v1274
    %v1276 = vpop.f32.mrf.mxu0
    %v1277 = vadd.f32 %v1164, %v1276
    %v1278 = vpop.f32.mrf.mxu0
    %1279 = vdwg.mxu0
    %1280 = vmatprep.subr.mxu0 0.0
    %1281 = vmatpush1.msra.mxu0 0.0
    %1282 = vmatprep.subr.mxu0 0.0
    %1283 = vmatpush1.msra.mxu0 0.0
    %1284 = vmatprep.subr.mxu0 0.0
    %1285 = vmatpush1.msra.mxu0 0.0
    %1286 = vmatprep.subr.mxu0 0.0
    %1287 = vmatpush1.msra.mxu0 0.0
    %1288 = vmatprep.subr.mxu0 0.0
    %1289 = vmatpush1.msra.mxu0 0.0
    %1290 = vmatprep.subr.mxu0 0.0
    %1291 = vmatpush1.msra.mxu0 0.0
    %1292 = vmatprep.subr.mxu0 0.0
    %1293 = vmatpush1.msra.mxu0 0.0
    %1294 = vmatprep.subr.mxu0 0.0
    %1295 = vmatpush1.msra.mxu0 0.0
    %1296 = vmatprep.subr.mxu0 0.0
    %v1297 = vand.u32 %v690, 4294901760
    %1298 = vmatpush1.msra.mxu0 %v1297
    %1299 = vmatprep.subr.mxu0 0.0
    %v1300 = vand.u32 %v689, 4294901760
    %1301 = vmatpush1.msra.mxu0 %v1300
    %1302 = vmatprep.subr.mxu0 0.0
    %v1303 = vand.u32 %v688, 4294901760
    %1304 = vmatpush1.msra.mxu0 %v1303
    %1305 = vmatprep.subr.mxu0 0.0
    %v1306 = vand.u32 %v687, 4294901760
    %1307 = vmatpush1.msra.mxu0 %v1306
    %1308 = vmatprep.subr.mxu0 0.0
    %v1309 = vand.u32 %v686, 4294901760
    %1310 = vmatpush1.msra.mxu0 %v1309
    %1311 = vmatprep.subr.mxu0 0.0
    %v1312 = vand.u32 %v685, 4294901760
    %1313 = vmatpush1.msra.mxu0 %v1312
    %1314 = vmatprep.subr.mxu0 0.0
    %v1315 = vand.u32 %v684, 4294901760
    %1316 = vmatpush1.msra.mxu0 %v1315
    %1317 = vmatprep.subr.mxu0 0.0
    %v1318 = vand.u32 %v683, 4294901760
    %1319 = vmatpush1.msra.mxu0 %v1318
    %1320 = vmatprep.subr.mxu0 0.0
    %1321 = vmatpush2.msra.mxu0 0.0
    %1322 = vmatprep.subr.mxu0 0.0
    %1323 = vmatpush2.msra.mxu0 0.0
    %1324 = vmatprep.subr.mxu0 0.0
    %1325 = vmatpush2.msra.mxu0 0.0
    %1326 = vmatprep.subr.mxu0 0.0
    %1327 = vmatpush2.msra.mxu0 0.0
    %1328 = vmatprep.subr.mxu0 0.0
    %1329 = vmatpush2.msra.mxu0 0.0
    %1330 = vmatprep.subr.mxu0 0.0
    %1331 = vmatpush2.msra.mxu0 0.0
    %1332 = vmatprep.subr.mxu0 0.0
    %1333 = vmatpush2.msra.mxu0 0.0
    %1334 = vmatprep.subr.mxu0 0.0
    %1335 = vmatpush2.msra.mxu0 0.0
    %1336 = vmatprep.subr.mxu0 0.0
    %1337 = vmatpush2.msra.mxu0 0.0
    %1338 = vmatprep.subr.mxu0 0.0
    %1339 = vmatpush2.msra.mxu0 0.0
    %1340 = vmatprep.subr.mxu0 0.0
    %1341 = vmatpush2.msra.mxu0 0.0
    %1342 = vmatprep.subr.mxu0 0.0
    %1343 = vmatpush2.msra.mxu0 0.0
    %1344 = vmatprep.subr.mxu0 0.0
    %1345 = vmatpush2.msra.mxu0 0.0
    %1346 = vmatprep.subr.mxu0 0.0
    %1347 = vmatpush2.msra.mxu0 0.0
    %1348 = vmatprep.subr.mxu0 0.0
    %1349 = vmatpush2.msra.mxu0 0.0
    %1350 = vmatprep.subr.mxu0 0.0
    %1351 = vmatpush2.msra.mxu0 0.0
    %1352 = vmatprep.mubr.f32.mxu0 0.0
    %v1353 = vand.u32 %v700, 4294901760
    %1354 = vmatmul.mubr.f32.gmra.mxu0 %v1353
    %v1355 = vpop.f32.mrf.mxu0
    %v1356 = vadd.f32 %v1259, %v1355
    %v1357 = vpop.f32.mrf.mxu0
    %1358 = vmatprep.mubr.f32.mxu0 0.0
    %v1359 = vand.u32 %v703, 4294901760
    %1360 = vmatmul.mubr.f32.gmra.mxu0 %v1359
    %v1361 = vpop.f32.mrf.mxu0
    %v1362 = vadd.f32 %v1265, %v1361
    %v1363 = vpop.f32.mrf.mxu0
    %1364 = vmatprep.mubr.f32.mxu0 0.0
    %v1365 = vand.u32 %v706, 4294901760
    %1366 = vmatmul.mubr.f32.gmra.mxu0 %v1365
    %v1367 = vpop.f32.mrf.mxu0
    %v1368 = vadd.f32 %v1271, %v1367
    %v1369 = vpop.f32.mrf.mxu0
    %1370 = vmatprep.mubr.f32.mxu0 0.0
    %v1371 = vand.u32 %v709, 4294901760
    %1372 = vmatmul.mubr.f32.gmra.mxu0 %v1371
    %v1373 = vpop.f32.mrf.mxu0
    %v1374 = vadd.f32 %v1277, %v1373
    %v1375 = vpop.f32.mrf.mxu0
    %1376 = vdwg.mxu0
    %1377 = vst.msk [vmem:[#allocation2] sm:$0xff] %vm36, %v1356
    %1378 = vst.msk [vmem:[#allocation2 + $0x8] sm:$0xff] %vm36, %v1362
    %1379 = vst.msk [vmem:[#allocation2 + $0x10] sm:$0xff] %vm36, %v1368
    %1380 = vst.msk [vmem:[#allocation2 + $0x18] sm:$0xff] %vm36, %v1374
    // Predicated region
    $region22: #{tpu_custom_call.1} parent=1 // pred_check
      _
    $region23: #{tpu_custom_call.1} parent=1 // pred_check_branch
      %1382 = sbr.rel (0) target = $region25
    $region24: #{tpu_custom_call.1} parent=1 // pred_region
      %s1384 = ssub.s32 512, 256
      %1385 = vsyncadd [#allocation3], %s1384
      %s1386 = sshll.u32 [#allocation2], 4
      %s1387 = int_to_ptr.vmem [resolvable:$true] %s1386
      %1392 = dma.vmem_to_hbm [thread:$0]  %s1387, 256, %s5, [#allocation3], 128, 128, 8
    $region25: #{tpu_custom_call.1} parent=1 // pred_fallthru
      _
    // Predicated region
    $region26: #{tpu_custom_call.1} parent=1 // pred_check
      _
    $region27: #{tpu_custom_call.1} parent=1 // pred_check_branch
      %1394 = sbr.rel (0) target = $region29
    $region28: #{tpu_custom_call.1} parent=1 // pred_region
      %1395 = dma.done [#allocation3], 512
    $region29: #{tpu_custom_call.1} parent=1 // pred_fallthru
      _
    %1396 = vsyncpa [#allocation3], 1

</llo_original>
